<compile_context>
chip_gen: v7x
topology: tpu7x:2x2x1
jax: 0.10.0
libtpu: 0.0.40
codegen_flags: <defaults>
</compile_context>

<pallas_src>
import numpy as np
import jax
import jax.numpy as jnp
from jax.experimental import pallas as pl
from jax.experimental.pallas import tpu as pltpu


def _round_up(x, m):
    return ((x + m - 1) // m) * m


_MAX_TILE = 32768
_STREAM_VMEM_BUDGET = 16 * 1024 * 1024      # double-buffered A + out streams
_VMEM_LIMIT_BYTES = 32 * 1024 * 1024        # safe on v5e/v6e (128 MiB) and v7x (64 MiB)


# ----------------------------------------------------------------------------
# Pallas kernel: out[b, :, tile] = W2 (C_out, K) @ A[b] (K, tn) + bias   (f32)
# ----------------------------------------------------------------------------
def _conv_matmul_kernel(w_ref, a_ref, b_ref, o_ref):
    acc = jnp.dot(w_ref[...], a_ref[...], preferred_element_type=jnp.float32)
    o_ref[...] = (acc + b_ref[...]).astype(o_ref.dtype)


def spherical_conv_matmul(w2, a, b2, *, tn, vmem_limit_bytes=_VMEM_LIMIT_BYTES):
    """w2: (C_out, K), a: (B, K, npix_pad), b2: (C_out, 1) f32 -> (B, C_out, npix_pad) f32."""
    B, K, npix_pad = a.shape
    C_out = w2.shape[0]
    assert npix_pad % tn == 0, "padded npix must be a multiple of the pixel tile"

    grid = (B, npix_pad // tn)
    return pl.pallas_call(
        _conv_matmul_kernel,
        out_shape=jax.ShapeDtypeStruct((B, C_out, npix_pad), jnp.float32),
        grid_spec=pltpu.PrefetchScalarGridSpec(
            num_scalar_prefetch=0,
            grid=grid,
            in_specs=[
                pl.BlockSpec((C_out, K), lambda b, j: (0, 0)),        # full weight (resident)
                pl.BlockSpec((None, K, tn), lambda b, j: (b, 0, j)),  # A pixel tile
                pl.BlockSpec((C_out, 1), lambda b, j: (0, 0)),        # bias column (resident)
            ],
            out_specs=pl.BlockSpec((None, C_out, tn), lambda b, j: (b, 0, j)),
        ),
        compiler_params=pltpu.CompilerParams(
            dimension_semantics=("parallel", "parallel"),
            vmem_limit_bytes=vmem_limit_bytes,
        ),
    )(w2, a, b2)


# ----------------------------------------------------------------------------
# Pixel-tile sizing: biggest lane tile whose double-buffered streams fit VMEM
# ----------------------------------------------------------------------------
def _choose_pixel_tile(npix_pad_base, B, K, C_out, a_dsize):
    sublane = (4 // a_dsize) * 8                      # 8 for f32, 16 for bf16
    k_pad = _round_up(K, sublane)
    c_out_pad = _round_up(C_out, 8)
    # double-buffered: A tile (compute dtype) + out tile (f32)
    per_col = 2 * (k_pad * a_dsize + c_out_pad * 4)
    tn = (_STREAM_VMEM_BUDGET // per_col) // 128 * 128
    tn = int(max(128, min(tn, _MAX_TILE, npix_pad_base)))
    # keep >= 4 parallel grid steps so v7x's two TensorCores stay balanced
    while tn > 512 and B * (npix_pad_base // tn) < 4:
        tn = max(128, (tn // 2) // 128 * 128)
    return tn


# ----------------------------------------------------------------------------
# sphericalConv forward (gather is index glue in XLA, contraction in Pallas)
# ----------------------------------------------------------------------------
def spherical_conv_forward(x, neighbours, weight, bias, *, compute_dtype=jnp.bfloat16):
    """
    x:          (B, C_in, npix)  float32
    neighbours: (9 * npix,)      int   (neighbours[9*p : 9*p+9] = neighbours of pixel p)
    weight:     (C_out, C_in, 9) float32  (PyTorch Conv1d layout)
    bias:       (C_out,)         float32
    returns:    (B, C_out, npix) float32
    """
    B, C_in, npix = x.shape
    C_out = weight.shape[0]
    K = C_in * 9

    out_dtype = x.dtype
    if compute_dtype is None:
        compute_dtype = x.dtype
    a_dsize = jnp.dtype(compute_dtype).itemsize

    npix_pad_base = _round_up(npix, 128)
    tn = _choose_pixel_tile(npix_pad_base, B, K, C_out, a_dsize)
    npix_pad = _round_up(npix_pad_base, tn)

    idx = neighbours.reshape(npix, 9).astype(jnp.int32)
    if npix_pad > npix:
        # Pad the (small) index table so the gather directly emits padded A;
        # padded columns gather pixel 0 and are sliced off at the end.
        pad = jnp.zeros((npix_pad - npix, 9), dtype=jnp.int32)
        idx = jnp.concatenate([idx, pad], axis=0)

    # Cast the streamed operand BEFORE the gather: halves both the im2col HBM
    # write and the kernel's dominant A read when compute_dtype is bf16.
    x_c = x.astype(compute_dtype)

    # im2col with npix on the lane axis:  a[b, 9*c + k, p] = x[b, c, idx[p, k]]
    # (matches weight.reshape(C_out, C_in*9), which flattens (c, k) with k inner)
    a = x_c[:, :, idx.T].reshape(B, K, npix_pad)

    w2 = weight.reshape(C_out, K).astype(compute_dtype)
    b2 = bias.reshape(C_out, 1).astype(jnp.float32)

    out = spherical_conv_matmul(w2, a, b2, tn=tn)      # f32 output
    return out[:, :, :npix].astype(out_dtype)          # drop the pixel padding


# ----------------------------------------------------------------------------
# Deterministic neighbour construction (synthetic placeholder for healpy)
# ----------------------------------------------------------------------------
def make_neighbours(npix):
    # Deterministic synthetic 9-neighbour table (self at slot 4), same layout
    # as the original module's `neighbours` buffer.
    offsets = np.array([-4, -3, -2, -1, 0, 1, 2, 3, 4], dtype=np.int64)
    pix = np.arange(npix, dtype=np.int64)[:, None]
    nb = (pix + offsets[None, :]) % npix              # (npix, 9), column 4 == self
    return jnp.asarray(nb.reshape(-1), dtype=jnp.int32)


if __name__ == "__main__":
    # Small shapes consistent with the module:
    NSIDE = 4
    npix = 12 * NSIDE * NSIDE        # 192 == hp.nside2npix(4)
    B, C_in, C_out = 2, 4, 8

    key = jax.random.PRNGKey(0)
    kx, kw = jax.random.split(key)

    x = jax.random.normal(kx, (B, C_in, npix), dtype=jnp.float32)

    # kaiming_normal_ (fan_in mode, gain=sqrt(2)) on Conv1d weight (C_out, C_in, 9)
    fan_in = C_in * 9
    std = float(np.sqrt(2.0 / fan_in))
    weight = jax.random.normal(kw, (C_out, C_in, 9), dtype=jnp.float32) * std
    bias = jnp.zeros((C_out,), dtype=jnp.float32)

    neighbours = make_neighbours(npix)

    fwd = jax.jit(spherical_conv_forward, static_argnames=("compute_dtype",))

    # Pure-JAX reference of the module semantics (gather + stride-9 conv1d), full f32.
    idx = neighbours.reshape(npix, 9)
    vec = x[:, :, idx]                                # (B, C_in, npix, 9)
    ref_f32 = jnp.einsum("bcpk,ock->bop", vec, weight,
                         precision=jax.lax.Precision.HIGHEST) + bias[None, :, None]

    # float32 path
    out_f32 = jax.block_until_ready(fwd(x, neighbours, weight, bias, compute_dtype=None))
    assert out_f32.shape == (B, C_out, npix), out_f32.shape
    np.testing.assert_allclose(np.asarray(out_f32), np.asarray(ref_f32),
                               rtol=1e-4, atol=1e-4)

    # default bf16-stream path (f32 accumulation, f32 output); compare against a
    # reference computed from the same bf16-rounded operands.
    out_bf16 = jax.block_until_ready(fwd(x, neighbours, weight, bias))
    assert out_bf16.shape == (B, C_out, npix), out_bf16.shape
    x_b = x.astype(jnp.bfloat16).astype(jnp.float32)
    w_b = weight.astype(jnp.bfloat16).astype(jnp.float32)
    ref_bf16 = jnp.einsum("bcpk,ock->bop", x_b[:, :, idx], w_b,
                          precision=jax.lax.Precision.HIGHEST) + bias[None, :, None]
    np.testing.assert_allclose(np.asarray(out_bf16), np.asarray(ref_bf16),
                               rtol=1e-3, atol=1e-3)

    print("KERNEL_OK")
</pallas_src>

<mosaic_0001>
module attributes {stable_mosaic.version = 11 : i64} {
  func.func @_conv_matmul_kernel(%arg0: i32, %arg1: i32, %arg2: memref<8x36xf32, #tpu.memory_space<vmem>>, %arg3: memref<1x36x256xf32, #tpu.memory_space<vmem>>, %arg4: memref<8x1xf32, #tpu.memory_space<vmem>>, %arg5: memref<1x8x256xf32, #tpu.memory_space<vmem>>) attributes {dimension_semantics = [#tpu.dimension_semantics<parallel>, #tpu.dimension_semantics<parallel>], iteration_bounds = array<i64: 2, 1>, scalar_prefetch = 0 : i64, scratch_operands = 0 : i64, tpu.core_type = #tpu.core_type<tc>, window_params = [{pipeline_mode = #tpu.pipeline_mode<synchronous>, transform_indices = @transform_0, window_bounds = array<i64: 8, 36>}, {transform_indices = @transform_1, window_bounds = array<i64: 1, 36, 256>}, {pipeline_mode = #tpu.pipeline_mode<synchronous>, transform_indices = @transform_2, window_bounds = array<i64: 8, 1>}, {transform_indices = @transform_3, window_bounds = array<i64: 1, 8, 256>}]} {
    %c0 = arith.constant 0 : index
    %c0_0 = arith.constant 0 : index
    %0 = vector.load %arg2[%c0, %c0_0] : memref<8x36xf32, #tpu.memory_space<vmem>>, vector<8x36xf32>
    %c0_1 = arith.constant 0 : index
    %c0_2 = arith.constant 0 : index
    %c0_3 = arith.constant 0 : index
    %1 = vector.load %arg3[%c0_1, %c0_2, %c0_3] : memref<1x36x256xf32, #tpu.memory_space<vmem>>, vector<1x36x256xf32>
    %2 = vector.shape_cast %1 : vector<1x36x256xf32> to vector<36x256xf32>
    %cst = arith.constant dense<0.000000e+00> : vector<8x256xf32>
    %3 = tpu.matmul %0, %2, %cst {dimension_numbers = #tpu.dot_dimension_numbers<[1], [0], [0], [1], [0, 0, 1, 1], [], []>} : vector<8x36xf32>, vector<36x256xf32>, vector<8x256xf32> -> vector<8x256xf32>
    %c0_4 = arith.constant 0 : index
    %c0_5 = arith.constant 0 : index
    %4 = vector.load %arg4[%c0_4, %c0_5] : memref<8x1xf32, #tpu.memory_space<vmem>>, vector<8x1xf32>
    %5 = vector.broadcast %4 : vector<8x1xf32> to vector<8x256xf32>
    %6 = arith.addf %3, %5 : vector<8x256xf32>
    %c0_6 = arith.constant 0 : index
    %c0_7 = arith.constant 0 : index
    %c0_8 = arith.constant 0 : index
    %7 = vector.load %arg5[%c0_6, %c0_7, %c0_8] : memref<1x8x256xf32, #tpu.memory_space<vmem>>, vector<1x8x256xf32>
    %8 = vector.shape_cast %7 : vector<1x8x256xf32> to vector<8x256xf32>
    %9 = vector.shape_cast %6 : vector<8x256xf32> to vector<1x8x256xf32>
    tpu.vector_store %arg5[%c0_6, %c0_7, %c0_8], %9 {strides = array<i32>} : memref<1x8x256xf32, #tpu.memory_space<vmem>>, vector<1x8x256xf32>,
    return
  }
  func.func @transform_0(%arg0: i32, %arg1: i32) -> (i32, i32) {
    %c0_i32 = arith.constant 0 : i32
    %c0_i32_0 = arith.constant 0 : i32
    %c0_i32_1 = arith.constant 0 : i32
    return %c0_i32, %c0_i32_0 : i32, i32
  }
  func.func @transform_1(%arg0: i32, %arg1: i32) -> (i32, i32, i32) {
    %c0_i32 = arith.constant 0 : i32
    %c0_i32_0 = arith.constant 0 : i32
    return %arg0, %c0_i32, %arg1 : i32, i32, i32
  }
  func.func @transform_2(%arg0: i32, %arg1: i32) -> (i32, i32) {
    %c0_i32 = arith.constant 0 : i32
    %c0_i32_0 = arith.constant 0 : i32
    %c0_i32_1 = arith.constant 0 : i32
    return %c0_i32, %c0_i32_0 : i32, i32
  }
  func.func @transform_3(%arg0: i32, %arg1: i32) -> (i32, i32, i32) {
    %c0_i32 = arith.constant 0 : i32
    %c0_i32_0 = arith.constant 0 : i32
    return %arg0, %c0_i32, %arg1 : i32, i32, i32
  }
}

</mosaic_0001>

<llo_original>
// kernel: spherical_conv_forward.1
$region0: #{spherical_conv_forward.1}
  #allocation0 [shape = 'u32[]', space=smem, size = 0x4, offset = 0x4, fixed_abs, tag = 'smem constant byte address 0x4 - core index']
  #allocation1 [shape = 'u32[144,128]{1,0:T(1,128)}', space=vmem, size = 0x12000, scoped, tag = 'internal scratch']
  %s0 = inlined_call_operand.vmem [shape: f32[8,36], index: 0, kind: input, shape index: {}]
  %s1 = inlined_call_operand.vmem [shape: f32[2,36,256], index: 1, kind: input, shape index: {}]
  %s2 = inlined_call_operand.vmem [shape: f32[8,1], index: 2, kind: input, shape index: {}]
  %s3 = inlined_call_operand.hbm [shape: f32[2,8,256], index: 3, kind: output, shape index: {}]
  %s4 = sld [smem:[#allocation0]]
  $region45: #{spherical_conv_forward.1} parent=0
    _
  %s6 = ssub.s32 1, %s4
  %s7 = scalar_select 0, %s6, %s4
  $region1: #{spherical_conv_forward.1} parent=0
    #allocation2 [shape = 'u8[16384]{0}', space=vmem, size = 0x4000, scoped, tag = 'output window, operand 0']
    #allocation3 [shape = 's32[2]{0}', space=sflag, size = 0x8, scoped, tag = 'scoped memory for spherical_conv_forward.1']
    %8 = vsyncpa [#allocation3], 0
    %s9 = scalar_lea.sflag [#allocation3], 1
    %10 = vsyncpa %s9, 0
    loop: start=0, step=1, limit=4
    $region2: #{spherical_conv_forward.1} parent=1 // loop_pre_header
      _
    $region3: #{spherical_conv_forward.1} parent=1 // loop_header
      %s12 = sphi 0, %s16
      %p13 = scmp.ge.s32.totalorder %s12, 4
      %s19 = sphi 0, %s31
      %s20 = sphi 0, %s27
      %s21 = sphi 0, %s19
      %s22 = sphi 0, %s20
      %s23 = sphi 0, %s21
      %s24 = sphi 0, %s22
      %s32 = sphi 0, %s32
      %s34 = sphi 0, %s32
      %s35 = sphi 0, %s34
      %s49 = sphi 0, %s35
      %s57 = sphi 0, %s59
      %s60 = sphi 0, %s57
      %s61 = sphi 0, %s60
      %s77 = sphi 0, %s61
      %s81 = sphi 0, %s81
      %s83 = sphi 0, %s81
      %s84 = sphi 0, %s83
      %s98 = sphi 0, %s84
      %s106 = sphi 0, %s108
      %s109 = sphi 0, %s106
      %s110 = sphi 0, %s109
      %s126 = sphi 0, %s110
    $region4: #{spherical_conv_forward.1} parent=1 // loop_header_branch
      %15 = sbr.rel (%p13) target = $region8
    $region5: #{spherical_conv_forward.1} parent=1 // loop_body
      %s17 = ssub.s32 %s12, 1
      %s18 = ssub.s32 %s12, 2
      %s25 = sadd.s32 1, %s20
      %p26 = scmp.ge.s32.totalorder %s25, 1
      %s27 = scalar_select %p26, 0, %s25
      %s28 = sadd.s32 1, %s19
      %s29 = scalar_select %p26, %s28, %s19
      %p30 = scmp.ge.s32.totalorder %s29, 2
      %s31 = scalar_select %p30, 0, %s29
      %s33 = sadd.s32 %s32, 1
      %p36 = scmp.eq.s32.totalorder %s12, 1
      %p37 = scmp.ne.s32.totalorder %s32, %s34
      %p38 = scmp.eq.s32.totalorder %s12, 0
      %p39 = por %p37, %p38
      %p40 = scmp.ne.s32.totalorder %s32, %s34
      %p41 = scmp.eq.s32.totalorder %s17, 1
      %p42 = por %p40, %p41
      %p43 = scmp.ne.s32.totalorder %s34, %s35
      %p44 = scmp.eq.s32.totalorder %s17, 0
      %p45 = por %p43, %p44
      %p46 = scmp.ne.s32.totalorder %s34, %s35
      %p47 = scmp.eq.s32.totalorder %s18, 1
      %p48 = por %p46, %p47
      %p50 = scmp.ne.s32.totalorder %s35, %s49
      %p51 = scmp.eq.s32.totalorder %s18, 0
      %p52 = por %p50, %p51
      %s53 = ssub.s32 %s19, %s31
      %s54 = ssub.s32 %s20, %s27
      %s55 = sor.u32 %s53, %s54
      %p56 = scmp.eq.s32.totalorder %s55, 0
      %s58 = sadd.s32 %s57, 1
      %s59 = scalar_select %p56, %s57, %s58
      %p62 = pneg %p56
      %p63 = scmp.eq.s32.totalorder %s12, 1
      %p64 = por %p62, %p63
      %p65 = scmp.ne.s32.totalorder %s57, %s60
      %p66 = scmp.eq.s32.totalorder %s12, 0
      %p67 = por %p65, %p66
      %p68 = scmp.ne.s32.totalorder %s57, %s60
      %p69 = scmp.eq.s32.totalorder %s17, 1
      %p70 = por %p68, %p69
      %p71 = scmp.ne.s32.totalorder %s60, %s61
      %p72 = scmp.eq.s32.totalorder %s17, 0
      %p73 = por %p71, %p72
      %p74 = scmp.ne.s32.totalorder %s60, %s61
      %p75 = scmp.eq.s32.totalorder %s18, 1
      %p76 = por %p74, %p75
      %p78 = scmp.ne.s32.totalorder %s61, %s77
      %p79 = scmp.eq.s32.totalorder %s18, 0
      %p80 = por %p78, %p79
      %s82 = sadd.s32 %s81, 1
      %p85 = scmp.eq.s32.totalorder %s12, 1
      %p86 = scmp.ne.s32.totalorder %s81, %s83
      %p87 = scmp.eq.s32.totalorder %s12, 0
      %p88 = por %p86, %p87
      %p89 = scmp.ne.s32.totalorder %s81, %s83
      %p90 = scmp.eq.s32.totalorder %s17, 1
      %p91 = por %p89, %p90
      %p92 = scmp.ne.s32.totalorder %s83, %s84
      %p93 = scmp.eq.s32.totalorder %s17, 0
      %p94 = por %p92, %p93
      %p95 = scmp.ne.s32.totalorder %s83, %s84
      %p96 = scmp.eq.s32.totalorder %s18, 1
      %p97 = por %p95, %p96
      %p99 = scmp.ne.s32.totalorder %s84, %s98
      %p100 = scmp.eq.s32.totalorder %s18, 0
      %p101 = por %p99, %p100
      %s102 = ssub.s32 %s19, %s31
      %s103 = ssub.s32 %s20, %s27
      %s104 = sor.u32 %s102, %s103
      %p105 = scmp.eq.s32.totalorder %s104, 0
      %s107 = sadd.s32 %s106, 1
      %s108 = scalar_select %p105, %s106, %s107
      %p111 = pneg %p105
      %p112 = scmp.eq.s32.totalorder %s12, 1
      %p113 = por %p111, %p112
      %p114 = scmp.ne.s32.totalorder %s106, %s109
      %p115 = scmp.eq.s32.totalorder %s12, 0
      %p116 = por %p114, %p115
      %p117 = scmp.ne.s32.totalorder %s106, %s109
      %p118 = scmp.eq.s32.totalorder %s17, 1
      %p119 = por %p117, %p118
      %p120 = scmp.ne.s32.totalorder %s109, %s110
      %p121 = scmp.eq.s32.totalorder %s17, 0
      %p122 = por %p120, %p121
      %p123 = scmp.ne.s32.totalorder %s109, %s110
      %p124 = scmp.eq.s32.totalorder %s18, 1
      %p125 = por %p123, %p124
      %p127 = scmp.ne.s32.totalorder %s110, %s126
      %p128 = scmp.eq.s32.totalorder %s18, 0
      %p129 = por %p127, %p128
      %p130 = scmp.le.s32.totalorder 1, %s12
      %p131 = scmp.lt.s32.totalorder %s12, 3
      %p132 = pnand %p130, %p131
      %p133 = pneg %p132
      // Predicated region
      $region9: #{spherical_conv_forward.1} parent=5 // pred_check
        _
      $region10: #{spherical_conv_forward.1} parent=5 // pred_check_branch
        %135 = sbr.rel (%p132) target = $region12
      $region11: #{spherical_conv_forward.1} parent=5 // pred_region
        %s136 = ssub.s32 %s12, 1
        // Predicated region
        $region13: #{spherical_conv_forward.1} parent=11 // pred_check
          %p137 = pneg %p45
        $region14: #{spherical_conv_forward.1} parent=11 // pred_check_branch
          %139 = sbr.rel (%p137) target = $region16
        $region15: #{spherical_conv_forward.1} parent=11 // pred_region
          _
        $region16: #{spherical_conv_forward.1} parent=11 // pred_fallthru
          _
        // Predicated region
        $region17: #{spherical_conv_forward.1} parent=11 // pred_check
          %p140 = pneg %p94
        $region18: #{spherical_conv_forward.1} parent=11 // pred_check_branch
          %142 = sbr.rel (%p140) target = $region20
        $region19: #{spherical_conv_forward.1} parent=11 // pred_region
          _
        $region20: #{spherical_conv_forward.1} parent=11 // pred_fallthru
          _
      $region12: #{spherical_conv_forward.1} parent=5 // pred_fallthru
        _
      %p143 = scmp.lt.s32.totalorder %s12, 2
      // Predicated region
      $region21: #{spherical_conv_forward.1} parent=5 // pred_check
        %p144 = pneg %p143
      $region22: #{spherical_conv_forward.1} parent=5 // pred_check_branch
        %146 = sbr.rel (%p144) target = $region24
      $region23: #{spherical_conv_forward.1} parent=5 // pred_region
        // Predicated region
        $region25: #{spherical_conv_forward.1} parent=23 // pred_check
          %p147 = pneg %p67
        $region26: #{spherical_conv_forward.1} parent=23 // pred_check_branch
          %149 = sbr.rel (%p147) target = $region28
        $region27: #{spherical_conv_forward.1} parent=23 // pred_region
          %s150 = smul.u32 2, %s20
          %p151 = scmp.lt.s32.totalorder %s19, 1
          %s152 = scalar_select %p151, %s19, 1
          %p153 = scmp.lt.s32.totalorder %s150, 1
          %s154 = scalar_select %p153, %s150, 1
          %s155 = smul.addr %s152, 10
          %s156 = sadd.s32 %s154, %s155
          %s157 = smul.addr %s156, 8
          %s158 = scalar_lea.vmem %s1, %s157
          %s159 = smul.u32 2, %s20
        $region28: #{spherical_conv_forward.1} parent=23 // pred_fallthru
          _
      $region24: #{spherical_conv_forward.1} parent=5 // pred_fallthru
        _
      %p160 = scmp.le.s32.totalorder 1, %s12
      %p161 = scmp.lt.s32.totalorder %s12, 3
      %p162 = pnand %p160, %p161
      %p163 = pneg %p162
      // Predicated region
      $region29: #{spherical_conv_forward.1} parent=5 // pred_check
        _
      $region30: #{spherical_conv_forward.1} parent=5 // pred_check_branch
        %165 = sbr.rel (%p162) target = $region32
      $region31: #{spherical_conv_forward.1} parent=5 // pred_region
        %s166 = ssub.s32 %s12, 1
        %p167 = pneg %p45
        %p168 = pneg %p42
        %s169 = smul.u32 2, %s22
        %p170 = scmp.lt.s32.totalorder %s21, 1
        %s171 = scalar_select %p170, %s21, 1
        %p172 = scmp.lt.s32.totalorder %s169, 1
        %s173 = scalar_select %p172, %s169, 1
        %s174 = smul.addr %s171, 10
        %s175 = sadd.s32 %s173, %s174
        %s176 = smul.addr %s175, 8
        %s177 = scalar_lea.vmem %s1, %s176
        %p178 = pneg %p73
        %p179 = pneg %p70
        %p180 = pneg %p94
        %p181 = pneg %p91
        %p182 = pneg %p122
        %p183 = pneg %p119
        %s184 = sand.u32 %s109, 1
        %s185 = scalar_lea.sflag [#allocation3], %s184
        %s186 = sand.u32 %s109, 1
        %s187 = smul.addr %s186, 16
        %s188 = scalar_lea.vmem [#allocation2], %s187
        %s189 = smul.u32 2, %s22
        %p190 = scmp.lt.s32.totalorder %s21, 1
        %s191 = scalar_select %p190, %s21, 1
        %p192 = scmp.lt.s32.totalorder %s189, 1
        %s193 = scalar_select %p192, %s189, 1
        %s194 = smul.addr %s191, 10
        %s195 = sadd.s32 %s193, %s194
        %s196 = smul.addr %s195, 8
        %s197 = scalar_lea.vmem %s1, %s196
        %s198 = smul.u32 2, %s22
        %s199 = smul.u32 2, %s22
        %v200 = vld [vmem:[%s0] sm:$0xff]
        %v201 = vld [vmem:[%s197] sm:$0xff]
        %v202 = vld [vmem:[%s197 + $0x8] sm:$0xff]
        %v203 = vld [vmem:[%s197 + $0x10] sm:$0xff]
        %v204 = vld [vmem:[%s197 + $0x18] sm:$0xff]
        %v205 = vld [vmem:[%s197 + $0x20] sm:$0xff]
        %v206 = vld [vmem:[%s197 + $0x28] sm:$0xff]
        %v207 = vld [vmem:[%s197 + $0x30] sm:$0xff]
        %v208 = vld [vmem:[%s197 + $0x38] sm:$0xff]
        %v209 = vld [vmem:[%s197 + $0x40] sm:$0xf]
        %v210 = vld [vmem:[%s197 + $0x48] sm:$0xf]
        %v211 = vld [vmem:[%s2] sm:$0xff]
        %213 = vset.pattern.permute.xlu0 0
        %214 = vperm.xlu0 %213, %v211
        %v215 = vpop.permute.xlu0 %214
        %vm217 = vcmask 293888
        %v219 = vsel %vm217, %v200, 0
        %vm221 = vcmask 1043456
        %v223 = vsel %vm221, %v209, 0
        %v226 = vsel %vm221, %v210, 0
        %228 = vmatprep.subr.mxu0 %v202
        %229 = vmatpush1.msra.mxu0 %v201
        %230 = vmatprep.subr.mxu0 %v204
        %231 = vmatpush1.msra.mxu0 %v203
        %232 = vmatprep.subr.mxu0 %v206
        %233 = vmatpush1.msra.mxu0 %v205
        %234 = vmatprep.subr.mxu0 %v208
        %235 = vmatpush1.msra.mxu0 %v207
        %236 = vmatprep.subr.mxu0 %v226
        %237 = vmatpush1.msra.mxu0 %v223
        %238 = vmatprep.subr.mxu0 0.0
        %239 = vmatpush1.msra.mxu0 0.0
        %240 = vmatprep.subr.mxu0 0.0
        %241 = vmatpush1.msra.mxu0 0.0
        %242 = vmatprep.subr.mxu0 0.0
        %243 = vmatpush1.msra.mxu0 0.0
        %244 = vmatprep.subr.mxu0 0.0
        %245 = vmatpush1.msra.mxu0 0.0
        %246 = vmatprep.subr.mxu0 0.0
        %247 = vmatpush1.msra.mxu0 0.0
        %248 = vmatprep.subr.mxu0 0.0
        %249 = vmatpush1.msra.mxu0 0.0
        %250 = vmatprep.subr.mxu0 0.0
        %251 = vmatpush1.msra.mxu0 0.0
        %252 = vmatprep.subr.mxu0 0.0
        %253 = vmatpush1.msra.mxu0 0.0
        %254 = vmatprep.subr.mxu0 0.0
        %255 = vmatpush1.msra.mxu0 0.0
        %256 = vmatprep.subr.mxu0 0.0
        %257 = vmatpush1.msra.mxu0 0.0
        %258 = vmatprep.subr.mxu0 0.0
        %259 = vmatpush1.msra.mxu0 0.0
        %260 = vmatprep.subr.mxu0 0.0
        %261 = vmatpush1.msra.mxu0 0.0
        %262 = vmatprep.subr.mxu0 0.0
        %263 = vmatpush1.msra.mxu0 0.0
        %264 = vmatprep.subr.mxu0 0.0
        %265 = vmatpush1.msra.mxu0 0.0
        %266 = vmatprep.subr.mxu0 0.0
        %267 = vmatpush1.msra.mxu0 0.0
        %268 = vmatprep.subr.mxu0 0.0
        %269 = vmatpush1.msra.mxu0 0.0
        %270 = vmatprep.subr.mxu0 0.0
        %271 = vmatpush1.msra.mxu0 0.0
        %272 = vmatprep.subr.mxu0 0.0
        %273 = vmatpush1.msra.mxu0 0.0
        %274 = vmatprep.subr.mxu0 0.0
        %275 = vmatpush1.msra.mxu0 0.0
        %276 = vmatprep.subr.mxu0 0.0
        %277 = vmatpush1.msra.mxu0 0.0
        %278 = vmatprep.subr.mxu0 0.0
        %279 = vmatpush1.msra.mxu0 0.0
        %280 = vmatprep.subr.mxu0 0.0
        %281 = vmatpush1.msra.mxu0 0.0
        %282 = vmatprep.subr.mxu0 0.0
        %283 = vmatpush1.msra.mxu0 0.0
        %284 = vmatprep.subr.mxu0 0.0
        %285 = vmatpush1.msra.mxu0 0.0
        %286 = vmatprep.subr.mxu0 0.0
        %287 = vmatpush1.msra.mxu0 0.0
        %288 = vmatprep.subr.mxu0 0.0
        %289 = vmatpush1.msra.mxu0 0.0
        %290 = vmatprep.subr.mxu0 0.0
        %291 = vmatpush1.msra.mxu0 0.0
        %292 = vmatprep.mubr.f32.mxu0 0.0
        %293 = vmatmul.mubr.f32.gmra.mrb[0].mxu0 %v219
        %v294 = vpop.f32.mrb[0].mxu0
        %v295 = vadd.f32 %v215, %v294
        %v296 = vpop.f32.mrb[0].mxu0
        %v297 = vadd.f32 %v215, %v296
        %298 = vdwg.mxu0
        %299 = vst [vmem:[%s188] sm:$0xff] %v295
        %300 = vst [vmem:[%s188 + $0x8] sm:$0xff] %v297
        %s301 = sand.u32 %s109, 1
        %s302 = scalar_lea.sflag [#allocation3], %s301
        %s303 = sand.u32 %s109, 1
        %s304 = smul.addr %s303, 16
        %s305 = scalar_lea.vmem [#allocation2], %s304
        // Predicated region
        $region33: #{spherical_conv_forward.1} parent=31 // pred_check
          %p306 = pneg %p119
        $region34: #{spherical_conv_forward.1} parent=31 // pred_check_branch
          %308 = sbr.rel (%p306) target = $region36
        $region35: #{spherical_conv_forward.1} parent=31 // pred_region
          %s309 = smul.u32 2, %s22
          %s311 = ssub.s32 256, 256
          %312 = vsyncadd %s302, %s311
          %s313 = smul.addr %s21, 2
          %s314 = sadd.s32 %s309, %s313
          %s315 = smul.addr %s314, 128
          %s316 = scalar_lea.hbm %s3, %s315
          %s318 = sshll.u32 %s305, 4
          %s319 = int_to_ptr.vmem [resolvable:$true] %s318
          %321 = dma.vmem_to_hbm [thread:$0]  %s319, 256, %s316, %s302
        $region36: #{spherical_conv_forward.1} parent=31 // pred_fallthru
          _
      $region32: #{spherical_conv_forward.1} parent=5 // pred_fallthru
        _
      %p322 = scmp.le.s32.totalorder 2, %s12
      // Predicated region
      $region37: #{spherical_conv_forward.1} parent=5 // pred_check
        %p323 = pneg %p322
      $region38: #{spherical_conv_forward.1} parent=5 // pred_check_branch
        %325 = sbr.rel (%p323) target = $region40
      $region39: #{spherical_conv_forward.1} parent=5 // pred_region
        %s326 = ssub.s32 %s12, 2
        // Predicated region
        $region41: #{spherical_conv_forward.1} parent=39 // pred_check
          %p327 = pneg %p125
        $region42: #{spherical_conv_forward.1} parent=39 // pred_check_branch
          %329 = sbr.rel (%p327) target = $region44
        $region43: #{spherical_conv_forward.1} parent=39 // pred_region
          %s330 = sand.u32 %s110, 1
          %s331 = scalar_lea.sflag [#allocation3], %s330
          %s332 = sand.u32 %s110, 1
          %s333 = smul.addr %s332, 16
          %s334 = scalar_lea.vmem [#allocation2], %s333
          %335 = dma.done %s331, 256
        $region44: #{spherical_conv_forward.1} parent=39 // pred_fallthru
          _
      $region40: #{spherical_conv_forward.1} parent=5 // pred_fallthru
        _
    $region6: #{spherical_conv_forward.1} parent=1 // loop_footer
      %s16 = sadd.s32 1, %s12
    $region7: #{spherical_conv_forward.1} parent=1 // loop_footer_branch
      %11 = sbr.rel target = $region3
    $region8: #{spherical_conv_forward.1} parent=1 // loop_exit
      _
    %336 = vsyncpa [#allocation3], 1
    %s337 = scalar_lea.sflag [#allocation3], 1
    %338 = vsyncpa %s337, 1

</llo_original>
